<compile_context>
chip_gen: v7x
topology: tpu7x:2x2x1
jax: 0.10.0
libtpu: 0.0.40
codegen_flags: <defaults>
</compile_context>

<pallas_src>
import jax
import jax.numpy as jnp
from jax.experimental import pallas as pl
from jax.experimental.pallas import tpu as pltpu


def gat_agg_kernel(h_ref, ssrc_ref, sdst_ref, adj_ref, b_ref, o_ref):
    """One destination-node tile: attention softmax + aggregation + bias + ReLU.

    h_ref    : (N_pad, O_pad) bf16  projected features of ALL source nodes (resident)
    ssrc_ref : (1, N_pad)     f32   per-source attention scores (resident)
    sdst_ref : (TI, 1)        f32   per-destination scores of this tile
    adj_ref  : (TI, N_pad)    int8  dst-major adjacency rows (self loops baked in)
    b_ref    : (1, O_pad)     f32   bias
    o_ref    : (TI, O_pad)    f32   output tile
    """
    # e[i, j] = LeakyReLU(s_dst[i] + s_src[j], 0.2); rows = dest i, lanes = src j.
    e = sdst_ref[...] + ssrc_ref[...]                          # (TI, N)
    e = jnp.maximum(e, 0.2 * e)                                # LeakyReLU(0.2)
    e = jnp.where(adj_ref[...] != 0, e, jnp.float32(-1e30))    # mask non-edges

    # Softmax over sources (lane axis) per destination row.
    m = jnp.max(e, axis=-1, keepdims=True)                     # (TI, 1)
    p = jnp.exp(e - m)                                         # (TI, N)
    denom = jnp.sum(p, axis=-1, keepdims=True)                 # (TI, 1)
    alpha = (p * pl.reciprocal(denom, approx=True)).astype(jnp.bfloat16)

    # Aggregate: plain (TI, N) @ (N, O) on the MXU, f32 accumulation.
    out = jnp.dot(alpha, h_ref[...], preferred_element_type=jnp.float32)
    out = out + b_ref[...]
    # ReLU (applied twice in the torch module; idempotent).
    o_ref[...] = jnp.maximum(out, 0.0)


def prepare_adjacency(adj, n_pad):
    """adj[src, dst] -> dst-major int8 mask with self loops, padded to n_pad.

    O(N^2) prep; hoist out of the per-forward path when adj is static.
    """
    n = adj.shape[0]
    adj_t = (adj != 0).astype(jnp.int8).T                      # adj_t[dst, src]
    adj_t = jnp.pad(adj_t, ((0, n_pad - n), (0, n_pad - n)))
    diag = jnp.arange(n_pad)
    return adj_t.at[diag, diag].set(jnp.int8(1))               # add_self_loops


def _vmem_limit_bytes(n_pad, ti, o_pad):
    """Generous working-set estimate, clamped below physical VMEM."""
    need = (
        2 * n_pad * o_pad * 2        # resident h (bf16), double-buffered
        + 2 * ti * n_pad * 1         # adj int8 block, double-buffered
        + 2 * ti * o_pad * 4         # output block
        + 6 * ti * n_pad * 4         # f32 elementwise temps (e, p, ...)
        + 4 * n_pad * 4 + 4 * o_pad * 4 + 4 * ti * 4
        + (2 << 20)                  # slack
    )
    try:
        cap = pltpu.get_tpu_info().vmem_capacity_bytes
    except Exception:
        cap = 64 << 20               # conservative fallback (v7x physical VMEM)
    return int(min(max(need, 16 << 20), cap - (8 << 20)))


def mgc_model_forward(x, adj, w_t, att_src, att_dst, bias, *, tile_rows=512):
    """Runs the Pallas GAT kernel; returns (1, N, out_num) like the torch module.

    tile_rows: destination-node tile (multiple of 128). 512 is a good default
    for v5e/v6e; prefer 128-256 on v7x (64 MiB VMEM) for large graphs.
    """
    n, f = x.shape
    o = w_t.shape[1]

    # Destination tile (multiple of 128) and padded sizes.
    ti = min(tile_rows, pl.cdiv(n, 128) * 128)
    n_pad = pl.cdiv(n, ti) * ti
    o_pad = pl.cdiv(o, 128) * 128          # lane-dense output -> unmasked stores

    # Hoisted projection + per-node attention scores (computed ONCE, not per tile).
    h = x.astype(jnp.float32) @ w_t.astype(jnp.float32)              # (N, O)
    s_src = jnp.sum(h * att_src.reshape(1, o), axis=-1)              # (N,)
    s_dst = jnp.sum(h * att_dst.reshape(1, o), axis=-1)              # (N,)

    h_p = jnp.pad(h, ((0, n_pad - n), (0, o_pad - o))).astype(jnp.bfloat16)
    ssrc_row = jnp.pad(s_src, (0, n_pad - n)).reshape(1, n_pad)
    sdst_col = jnp.pad(s_dst, (0, n_pad - n)).reshape(n_pad, 1)
    b_p = jnp.pad(bias.reshape(1, o).astype(jnp.float32),
                  ((0, 0), (0, o_pad - o)))

    # Padded destinations get only their self loop (well-defined softmax) and
    # are sliced off below; padded sources are fully masked.
    adj_t = prepare_adjacency(adj, n_pad)                            # (n_pad, n_pad) i8

    grid = (n_pad // ti,)

    out = pl.pallas_call(
        gat_agg_kernel,
        out_shape=jax.ShapeDtypeStruct((n_pad, o_pad), jnp.float32),
        grid=grid,
        in_specs=[
            pl.BlockSpec((n_pad, o_pad), lambda i: (0, 0)),   # h, resident
            pl.BlockSpec((1, n_pad), lambda i: (0, 0)),       # s_src row, resident
            pl.BlockSpec((ti, 1), lambda i: (i, 0)),          # s_dst tile
            pl.BlockSpec((ti, n_pad), lambda i: (i, 0)),      # adj rows (contiguous)
            pl.BlockSpec((1, o_pad), lambda i: (0, 0)),       # bias
        ],
        out_specs=pl.BlockSpec((ti, o_pad), lambda i: (i, 0)),
        compiler_params=pltpu.CompilerParams(
            dimension_semantics=("parallel",),
            vmem_limit_bytes=_vmem_limit_bytes(n_pad, ti, o_pad)),
    )(h_p, ssrc_row, sdst_col, adj_t, b_p)

    # torch: relu -> unsqueeze(0) -> cat on empty -> relu  => (1, N, out_num)
    return out[None, :n, :o]


def mgc_reference(x, adj, w_t, att_src, att_dst, bias):
    """Pure-JAX f32 reference of the torch forward pass."""
    n = x.shape[0]
    h = x @ w_t
    s_src = h @ att_src.reshape(-1, 1)                       # (N, 1)
    s_dst = h @ att_dst.reshape(-1, 1)                       # (N, 1)
    e = s_dst + s_src.T                                      # e[i, j]
    e = jnp.where(e > 0, e, 0.2 * e)
    mask = (adj.T != 0) | jnp.eye(n, dtype=jnp.bool_)
    e = jnp.where(mask, e, -1e30)
    alpha = jax.nn.softmax(e, axis=-1)
    out = alpha @ h + bias.reshape(1, -1)
    return jnp.maximum(out, 0.0)[None]


if __name__ == "__main__":
    # Small shapes consistent with the module.
    N = 16            # number of graph nodes
    feature_num = 8   # in_features
    hidden_num = 32   # stored by the torch module, unused in forward
    out_num = 32      # out_features

    key = jax.random.PRNGKey(0)
    k_x, k_adj, k_w, k_as, k_ad, k_b = jax.random.split(key, 6)

    # Inputs.
    x = jax.random.normal(k_x, (N, feature_num), dtype=jnp.float32)
    adj = (jax.random.uniform(k_adj, (N, N)) < 0.3).astype(jnp.float32)

    # Deterministic GATConv parameters (heads=1).
    #   lin.weight : (out_num, feature_num) -> passed transposed (F, O)
    #   att_src    : (1, 1, out_num)        -> (1, O)
    #   att_dst    : (1, 1, out_num)        -> (1, O)
    #   bias       : (out_num,)             -> (1, O)
    w_t = 0.1 * jax.random.normal(k_w, (feature_num, out_num), dtype=jnp.float32)
    att_src = 0.1 * jax.random.normal(k_as, (1, out_num), dtype=jnp.float32)
    att_dst = 0.1 * jax.random.normal(k_ad, (1, out_num), dtype=jnp.float32)
    bias = 0.1 * jax.random.normal(k_b, (1, out_num), dtype=jnp.float32)

    out = mgc_model_forward(x, adj, w_t, att_src, att_dst, bias)
    out = jax.block_until_ready(out)

    assert out.shape == (1, N, out_num), out.shape
    assert bool(jnp.all(out >= 0.0))  # relu applied

    # Check against the f32 reference (tolerance covers bf16 MXU operands).
    ref = mgc_reference(x, adj, w_t, att_src, att_dst, bias)
    max_err = float(jnp.max(jnp.abs(out - ref)))
    assert max_err < 5e-2, max_err

    print("KERNEL_OK")
</pallas_src>

<mosaic_0001>
module attributes {stable_mosaic.version = 11 : i64} {
  func.func @gat_agg_kernel(%arg0: i32, %arg1: memref<128x128xbf16, #tpu.memory_space<vmem>>, %arg2: memref<1x128xf32, #tpu.memory_space<vmem>>, %arg3: memref<128x1xf32, #tpu.memory_space<vmem>>, %arg4: memref<128x128xi8, #tpu.memory_space<vmem>>, %arg5: memref<1x128xf32, #tpu.memory_space<vmem>>, %arg6: memref<128x128xf32, #tpu.memory_space<vmem>>) attributes {dimension_semantics = [#tpu.dimension_semantics<parallel>], iteration_bounds = array<i64: 1>, scalar_prefetch = 0 : i64, scratch_operands = 0 : i64, tpu.core_type = #tpu.core_type<tc>, window_params = [{pipeline_mode = #tpu.pipeline_mode<synchronous>, transform_indices = @transform_0, window_bounds = array<i64: 128, 128>}, {pipeline_mode = #tpu.pipeline_mode<synchronous>, transform_indices = @transform_1, window_bounds = array<i64: 1, 128>}, {transform_indices = @transform_2, window_bounds = array<i64: 128, 1>}, {transform_indices = @transform_3, window_bounds = array<i64: 128, 128>}, {pipeline_mode = #tpu.pipeline_mode<synchronous>, transform_indices = @transform_4, window_bounds = array<i64: 1, 128>}, {transform_indices = @transform_5, window_bounds = array<i64: 128, 128>}]} {
    %c0 = arith.constant 0 : index
    %c0_0 = arith.constant 0 : index
    %0 = vector.load %arg3[%c0, %c0_0] : memref<128x1xf32, #tpu.memory_space<vmem>>, vector<128x1xf32>
    %c0_1 = arith.constant 0 : index
    %c0_2 = arith.constant 0 : index
    %1 = vector.load %arg2[%c0_1, %c0_2] : memref<1x128xf32, #tpu.memory_space<vmem>>, vector<1x128xf32>
    %2 = vector.broadcast %0 : vector<128x1xf32> to vector<128x128xf32>
    %3 = vector.broadcast %1 : vector<1x128xf32> to vector<128x128xf32>
    %4 = arith.addf %2, %3 : vector<128x128xf32>
    %cst = arith.constant 2.000000e-01 : f32
    %5 = vector.broadcast %cst : f32 to vector<128x128xf32>
    %6 = arith.mulf %5, %4 : vector<128x128xf32>
    %7 = arith.maximumf %4, %6 : vector<128x128xf32>
    %c0_3 = arith.constant 0 : index
    %c0_4 = arith.constant 0 : index
    %8 = vector.load %arg4[%c0_3, %c0_4] : memref<128x128xi8, #tpu.memory_space<vmem>>, vector<128x128xi8>
    %c0_i8 = arith.constant 0 : i8
    %9 = vector.broadcast %c0_i8 : i8 to vector<128x128xi8>
    %10 = arith.cmpi ne, %8, %9 : vector<128x128xi8>
    %cst_5 = arith.constant -1.000000e+30 : f32
    %11 = vector.broadcast %cst_5 : f32 to vector<128x128xf32>
    %12 = arith.select %10, %7, %11 : vector<128x128xi1>, vector<128x128xf32>
    %cst_6 = arith.constant dense<0xFF800000> : vector<128xf32>
    %13 = vector.multi_reduction <maximumf>, %12, %cst_6 [1] : vector<128x128xf32> to vector<128xf32>
    %14 = vector.shape_cast %13 : vector<128xf32> to vector<128x1xf32>
    %15 = vector.broadcast %14 : vector<128x1xf32> to vector<128x128xf32>
    %16 = arith.subf %12, %15 : vector<128x128xf32>
    %17 = math.exp %16 : vector<128x128xf32>
    %cst_7 = arith.constant dense<0.000000e+00> : vector<128xf32>
    %18 = vector.multi_reduction <add>, %17, %cst_7 [1] : vector<128x128xf32> to vector<128xf32>
    %19 = vector.shape_cast %18 : vector<128xf32> to vector<128x1xf32>
    %20 = tpu.reciprocal %19 {approx = true} : vector<128x1xf32> -> vector<128x1xf32>
    %21 = vector.broadcast %20 : vector<128x1xf32> to vector<128x128xf32>
    %22 = arith.mulf %17, %21 : vector<128x128xf32>
    %23 = arith.truncf %22 : vector<128x128xf32> to vector<128x128xbf16>
    %c0_8 = arith.constant 0 : index
    %c0_9 = arith.constant 0 : index
    %24 = vector.load %arg1[%c0_8, %c0_9] : memref<128x128xbf16, #tpu.memory_space<vmem>>, vector<128x128xbf16>
    %cst_10 = arith.constant dense<0.000000e+00> : vector<128x128xf32>
    %25 = tpu.matmul %23, %24, %cst_10 {dimension_numbers = #tpu.dot_dimension_numbers<[1], [0], [0], [1], [0, 0, 1, 1], [], []>} : vector<128x128xbf16>, vector<128x128xbf16>, vector<128x128xf32> -> vector<128x128xf32>
    %c0_11 = arith.constant 0 : index
    %c0_12 = arith.constant 0 : index
    %26 = vector.load %arg5[%c0_11, %c0_12] : memref<1x128xf32, #tpu.memory_space<vmem>>, vector<1x128xf32>
    %27 = vector.broadcast %26 : vector<1x128xf32> to vector<128x128xf32>
    %28 = arith.addf %25, %27 : vector<128x128xf32>
    %cst_13 = arith.constant 0.000000e+00 : f32
    %29 = vector.broadcast %cst_13 : f32 to vector<128x128xf32>
    %30 = arith.maximumf %28, %29 : vector<128x128xf32>
    %c0_14 = arith.constant 0 : index
    %c0_15 = arith.constant 0 : index
    %31 = vector.load %arg6[%c0_14, %c0_15] : memref<128x128xf32, #tpu.memory_space<vmem>>, vector<128x128xf32>
    tpu.vector_store %arg6[%c0_14, %c0_15], %30 {strides = array<i32>} : memref<128x128xf32, #tpu.memory_space<vmem>>, vector<128x128xf32>,
    return
  }
  func.func @transform_0(%arg0: i32) -> (i32, i32) {
    %c0_i32 = arith.constant 0 : i32
    %c0_i32_0 = arith.constant 0 : i32
    %c0_i32_1 = arith.constant 0 : i32
    return %c0_i32, %c0_i32_0 : i32, i32
  }
  func.func @transform_1(%arg0: i32) -> (i32, i32) {
    %c0_i32 = arith.constant 0 : i32
    %c0_i32_0 = arith.constant 0 : i32
    %c0_i32_1 = arith.constant 0 : i32
    return %c0_i32, %c0_i32_0 : i32, i32
  }
  func.func @transform_2(%arg0: i32) -> (i32, i32) {
    %c0_i32 = arith.constant 0 : i32
    %c0_i32_0 = arith.constant 0 : i32
    return %arg0, %c0_i32 : i32, i32
  }
  func.func @transform_3(%arg0: i32) -> (i32, i32) {
    %c0_i32 = arith.constant 0 : i32
    %c0_i32_0 = arith.constant 0 : i32
    return %arg0, %c0_i32 : i32, i32
  }
  func.func @transform_4(%arg0: i32) -> (i32, i32) {
    %c0_i32 = arith.constant 0 : i32
    %c0_i32_0 = arith.constant 0 : i32
    %c0_i32_1 = arith.constant 0 : i32
    return %c0_i32, %c0_i32_0 : i32, i32
  }
  func.func @transform_5(%arg0: i32) -> (i32, i32) {
    %c0_i32 = arith.constant 0 : i32
    %c0_i32_0 = arith.constant 0 : i32
    return %arg0, %c0_i32 : i32, i32
  }
}

</mosaic_0001>

<llo_original>
// kernel: tpu_custom_call.1
$region0: #{tpu_custom_call.1}
  #allocation0 [shape = 'u32[]', space=smem, size = 0x4, offset = 0x4, fixed_abs, tag = 'smem constant byte address 0x4 - core index']
  #allocation1 [shape = 'u32[144,128]{1,0:T(1,128)}', space=vmem, size = 0x12000, scoped, tag = 'internal scratch']
  %s0 = inlined_call_operand.vmem [shape: bf16[128,128], index: 0, kind: input, shape index: {}]
  %s1 = inlined_call_operand.vmem [shape: f32[1,128], index: 1, kind: input, shape index: {}]
  %s2 = inlined_call_operand.vmem [shape: f32[128,1], index: 2, kind: input, shape index: {}]
  %s3 = inlined_call_operand.vmem [shape: s8[128,128], index: 3, kind: input, shape index: {}]
  %s4 = inlined_call_operand.vmem [shape: f32[1,128], index: 4, kind: input, shape index: {}]
  %s5 = inlined_call_operand.hbm [shape: f32[128,128], index: 5, kind: output, shape index: {}]
  %s6 = sld [smem:[#allocation0]]
  $region30: #{tpu_custom_call.1} parent=0
    _
  %s8 = ssub.s32 1, %s6
  %s9 = scalar_select 0, %s8, %s6
  $region1: #{tpu_custom_call.1} parent=0
    #allocation2 [shape = 'u8[65536]{0}', space=vmem, size = 0x10000, scoped, tag = 'output window, operand 0, single buffered']
    #allocation3 [shape = 's32[1]{0}', space=sflag, size = 0x4, scoped, tag = 'scoped memory for tpu_custom_call.1']
    %10 = vsyncpa [#allocation3], 0
    // Predicated region
    $region2: #{tpu_custom_call.1} parent=1 // pred_check
      _
    $region3: #{tpu_custom_call.1} parent=1 // pred_check_branch
      %12 = sbr.rel (0) target = $region5
    $region4: #{tpu_custom_call.1} parent=1 // pred_region
      _
    $region5: #{tpu_custom_call.1} parent=1 // pred_fallthru
      _
    // Predicated region
    $region6: #{tpu_custom_call.1} parent=1 // pred_check
      _
    $region7: #{tpu_custom_call.1} parent=1 // pred_check_branch
      %14 = sbr.rel (0) target = $region9
    $region8: #{tpu_custom_call.1} parent=1 // pred_region
      _
    $region9: #{tpu_custom_call.1} parent=1 // pred_fallthru
      _
    // Predicated region
    $region10: #{tpu_custom_call.1} parent=1 // pred_check
      _
    $region11: #{tpu_custom_call.1} parent=1 // pred_check_branch
      %16 = sbr.rel (0) target = $region13
    $region12: #{tpu_custom_call.1} parent=1 // pred_region
      _
    $region13: #{tpu_custom_call.1} parent=1 // pred_fallthru
      _
    // Predicated region
    $region14: #{tpu_custom_call.1} parent=1 // pred_check
      _
    $region15: #{tpu_custom_call.1} parent=1 // pred_check_branch
      %18 = sbr.rel (0) target = $region17
    $region16: #{tpu_custom_call.1} parent=1 // pred_region
      _
    $region17: #{tpu_custom_call.1} parent=1 // pred_fallthru
      _
    // Predicated region
    $region18: #{tpu_custom_call.1} parent=1 // pred_check
      _
    $region19: #{tpu_custom_call.1} parent=1 // pred_check_branch
      %20 = sbr.rel (0) target = $region21
    $region20: #{tpu_custom_call.1} parent=1 // pred_region
      _
    $region21: #{tpu_custom_call.1} parent=1 // pred_fallthru
      _
    %v24 = vld [vmem:[%s2] sm:$0xff]
    %v25 = vld [vmem:[%s2 + $0x8] sm:$0xff]
    %v26 = vld [vmem:[%s2 + $0x10] sm:$0xff]
    %v27 = vld [vmem:[%s2 + $0x18] sm:$0xff]
    %v28 = vld [vmem:[%s2 + $0x20] sm:$0xff]
    %v29 = vld [vmem:[%s2 + $0x28] sm:$0xff]
    %v30 = vld [vmem:[%s2 + $0x30] sm:$0xff]
    %v31 = vld [vmem:[%s2 + $0x38] sm:$0xff]
    %v32 = vld [vmem:[%s2 + $0x40] sm:$0xff]
    %v33 = vld [vmem:[%s2 + $0x48] sm:$0xff]
    %v34 = vld [vmem:[%s2 + $0x50] sm:$0xff]
    %v35 = vld [vmem:[%s2 + $0x58] sm:$0xff]
    %v36 = vld [vmem:[%s2 + $0x60] sm:$0xff]
    %v37 = vld [vmem:[%s2 + $0x68] sm:$0xff]
    %v38 = vld [vmem:[%s2 + $0x70] sm:$0xff]
    %v39 = vld [vmem:[%s2 + $0x78] sm:$0xff]
    %v40 = vld [vmem:[%s1] sm:$0x1]
    %42 = vset.pattern.permute.xlu0 0
    %43 = vperm.xlu0 %42, %v24
    %v44 = vpop.permute.xlu0 %43
    %47 = vset.pattern.permute.xlu0 0
    %48 = vperm.xlu0 %47, %v25
    %v49 = vpop.permute.xlu0 %48
    %52 = vset.pattern.permute.xlu0 0
    %53 = vperm.xlu0 %52, %v26
    %v54 = vpop.permute.xlu0 %53
    %57 = vset.pattern.permute.xlu0 0
    %58 = vperm.xlu0 %57, %v27
    %v59 = vpop.permute.xlu0 %58
    %62 = vset.pattern.permute.xlu0 0
    %63 = vperm.xlu0 %62, %v28
    %v64 = vpop.permute.xlu0 %63
    %67 = vset.pattern.permute.xlu0 0
    %68 = vperm.xlu0 %67, %v29
    %v69 = vpop.permute.xlu0 %68
    %72 = vset.pattern.permute.xlu0 0
    %73 = vperm.xlu0 %72, %v30
    %v74 = vpop.permute.xlu0 %73
    %77 = vset.pattern.permute.xlu0 0
    %78 = vperm.xlu0 %77, %v31
    %v79 = vpop.permute.xlu0 %78
    %82 = vset.pattern.permute.xlu0 0
    %83 = vperm.xlu0 %82, %v32
    %v84 = vpop.permute.xlu0 %83
    %87 = vset.pattern.permute.xlu0 0
    %88 = vperm.xlu0 %87, %v33
    %v89 = vpop.permute.xlu0 %88
    %92 = vset.pattern.permute.xlu0 0
    %93 = vperm.xlu0 %92, %v34
    %v94 = vpop.permute.xlu0 %93
    %97 = vset.pattern.permute.xlu0 0
    %98 = vperm.xlu0 %97, %v35
    %v99 = vpop.permute.xlu0 %98
    %102 = vset.pattern.permute.xlu0 0
    %103 = vperm.xlu0 %102, %v36
    %v104 = vpop.permute.xlu0 %103
    %107 = vset.pattern.permute.xlu0 0
    %108 = vperm.xlu0 %107, %v37
    %v109 = vpop.permute.xlu0 %108
    %112 = vset.pattern.permute.xlu0 0
    %113 = vperm.xlu0 %112, %v38
    %v114 = vpop.permute.xlu0 %113
    %117 = vset.pattern.permute.xlu0 0
    %118 = vperm.xlu0 %117, %v39
    %v119 = vpop.permute.xlu0 %118
    %v122 = vlaneseq
    %v123 = vshrl.u32 %v122, 7
    %v124 = vsub.s32 0, %v123
    %v125 = vrot.slane %v40, %v124
    %v127 = vadd.f32 %v44, %v125
    %v128 = vadd.f32 %v49, %v125
    %v129 = vadd.f32 %v54, %v125
    %v130 = vadd.f32 %v59, %v125
    %v131 = vadd.f32 %v64, %v125
    %v132 = vadd.f32 %v69, %v125
    %v133 = vadd.f32 %v74, %v125
    %v134 = vadd.f32 %v79, %v125
    %v135 = vadd.f32 %v84, %v125
    %v136 = vadd.f32 %v89, %v125
    %v137 = vadd.f32 %v94, %v125
    %v138 = vadd.f32 %v99, %v125
    %v139 = vadd.f32 %v104, %v125
    %v140 = vadd.f32 %v109, %v125
    %v141 = vadd.f32 %v114, %v125
    %v142 = vadd.f32 %v119, %v125
    %v143 = vmul.f32 %v127, 0.2
    %v144 = vmul.f32 %v128, 0.2
    %v145 = vmul.f32 %v129, 0.2
    %v146 = vmul.f32 %v130, 0.2
    %v147 = vmul.f32 %v131, 0.2
    %v148 = vmul.f32 %v132, 0.2
    %v149 = vmul.f32 %v133, 0.2
    %v150 = vmul.f32 %v134, 0.2
    %v151 = vmul.f32 %v135, 0.2
    %v152 = vmul.f32 %v136, 0.2
    %v153 = vmul.f32 %v137, 0.2
    %v154 = vmul.f32 %v138, 0.2
    %v155 = vmul.f32 %v139, 0.2
    %v156 = vmul.f32 %v140, 0.2
    %v157 = vmul.f32 %v141, 0.2
    %v158 = vmul.f32 %v142, 0.2
    %v159 = vmax.f32 %v127, %v143
    %v160 = vmax.f32 %v128, %v144
    %v161 = vmax.f32 %v129, %v145
    %v162 = vmax.f32 %v130, %v146
    %v163 = vmax.f32 %v131, %v147
    %v164 = vmax.f32 %v132, %v148
    %v165 = vmax.f32 %v133, %v149
    %v166 = vmax.f32 %v134, %v150
    %v167 = vmax.f32 %v135, %v151
    %v168 = vmax.f32 %v136, %v152
    %v169 = vmax.f32 %v137, %v153
    %v170 = vmax.f32 %v138, %v154
    %v171 = vmax.f32 %v139, %v155
    %v172 = vmax.f32 %v140, %v156
    %v173 = vmax.f32 %v141, %v157
    %v174 = vmax.f32 %v142, %v158
    %v175 = vld [vmem:[%s3] sm:$0xff]
    %v176 = vld [vmem:[%s3 + $0x8] sm:$0xff]
    %v177 = vld [vmem:[%s3 + $0x10] sm:$0xff]
    %v178 = vld [vmem:[%s3 + $0x18] sm:$0xff]
    %vm179 = vnez %v175
    %vm180 = vnez %v176
    %vm181 = vnez %v177
    %vm182 = vnez %v178
    %v183 = vsel %vm179, 16843009, 0
    %v184 = vsel %vm180, 16843009, 0
    %v185 = vsel %vm181, 16843009, 0
    %v186 = vsel %vm182, 16843009, 0
    %v187 = vunpack.c.0.s8 %v183
    %v188 = vunpack.c.1.s8 %v183
    %v189 = vunpack.c.2.s8 %v183
    %v190 = vunpack.c.3.s8 %v183
    %v191 = vunpack.c.0.s8 %v184
    %v192 = vunpack.c.1.s8 %v184
    %v193 = vunpack.c.2.s8 %v184
    %v194 = vunpack.c.3.s8 %v184
    %v195 = vunpack.c.0.s8 %v185
    %v196 = vunpack.c.1.s8 %v185
    %v197 = vunpack.c.2.s8 %v185
    %v198 = vunpack.c.3.s8 %v185
    %v199 = vunpack.c.0.s8 %v186
    %v200 = vunpack.c.1.s8 %v186
    %v201 = vunpack.c.2.s8 %v186
    %v202 = vunpack.c.3.s8 %v186
    %v203 = vpack.c.b16 %v187, %v187
    %v204 = vpack.c.b8 %v203, %v203
    %v205 = vpack.c.b16 %v188, %v188
    %v206 = vpack.c.b8 %v205, %v205
    %v207 = vpack.c.b16 %v189, %v189
    %v208 = vpack.c.b8 %v207, %v207
    %v209 = vpack.c.b16 %v190, %v190
    %v210 = vpack.c.b8 %v209, %v209
    %v211 = vpack.c.b16 %v191, %v191
    %v212 = vpack.c.b8 %v211, %v211
    %v213 = vpack.c.b16 %v192, %v192
    %v214 = vpack.c.b8 %v213, %v213
    %v215 = vpack.c.b16 %v193, %v193
    %v216 = vpack.c.b8 %v215, %v215
    %v217 = vpack.c.b16 %v194, %v194
    %v218 = vpack.c.b8 %v217, %v217
    %v219 = vpack.c.b16 %v195, %v195
    %v220 = vpack.c.b8 %v219, %v219
    %v221 = vpack.c.b16 %v196, %v196
    %v222 = vpack.c.b8 %v221, %v221
    %v223 = vpack.c.b16 %v197, %v197
    %v224 = vpack.c.b8 %v223, %v223
    %v225 = vpack.c.b16 %v198, %v198
    %v226 = vpack.c.b8 %v225, %v225
    %v227 = vpack.c.b16 %v199, %v199
    %v228 = vpack.c.b8 %v227, %v227
    %v229 = vpack.c.b16 %v200, %v200
    %v230 = vpack.c.b8 %v229, %v229
    %v231 = vpack.c.b16 %v201, %v201
    %v232 = vpack.c.b8 %v231, %v231
    %v233 = vpack.c.b16 %v202, %v202
    %v234 = vpack.c.b8 %v233, %v233
    %vm235 = vnez %v204
    %vm236 = vnez %v206
    %vm237 = vnez %v208
    %vm238 = vnez %v210
    %vm239 = vnez %v212
    %vm240 = vnez %v214
    %vm241 = vnez %v216
    %vm242 = vnez %v218
    %vm243 = vnez %v220
    %vm244 = vnez %v222
    %vm245 = vnez %v224
    %vm246 = vnez %v226
    %vm247 = vnez %v228
    %vm248 = vnez %v230
    %vm249 = vnez %v232
    %vm250 = vnez %v234
    %v251 = vsel %vm235, 16843009, 0
    %v252 = vsel %vm236, 16843009, 0
    %v253 = vsel %vm237, 16843009, 0
    %v254 = vsel %vm238, 16843009, 0
    %v255 = vsel %vm239, 16843009, 0
    %v256 = vsel %vm240, 16843009, 0
    %v257 = vsel %vm241, 16843009, 0
    %v258 = vsel %vm242, 16843009, 0
    %v259 = vsel %vm243, 16843009, 0
    %v260 = vsel %vm244, 16843009, 0
    %v261 = vsel %vm245, 16843009, 0
    %v262 = vsel %vm246, 16843009, 0
    %v263 = vsel %vm247, 16843009, 0
    %v264 = vsel %vm248, 16843009, 0
    %v265 = vsel %vm249, 16843009, 0
    %v266 = vsel %vm250, 16843009, 0
    %v267 = vunpack.c.0.s8 %v251
    %v268 = vunpack.c.0.s8 %v252
    %v269 = vunpack.c.0.s8 %v253
    %v270 = vunpack.c.0.s8 %v254
    %v271 = vunpack.c.0.s8 %v255
    %v272 = vunpack.c.0.s8 %v256
    %v273 = vunpack.c.0.s8 %v257
    %v274 = vunpack.c.0.s8 %v258
    %v275 = vunpack.c.0.s8 %v259
    %v276 = vunpack.c.0.s8 %v260
    %v277 = vunpack.c.0.s8 %v261
    %v278 = vunpack.c.0.s8 %v262
    %v279 = vunpack.c.0.s8 %v263
    %v280 = vunpack.c.0.s8 %v264
    %v281 = vunpack.c.0.s8 %v265
    %v282 = vunpack.c.0.s8 %v266
    %vm283 = vcmp.ne.s32.totalorder %v267, 0
    %vm284 = vcmp.ne.s32.totalorder %v268, 0
    %vm285 = vcmp.ne.s32.totalorder %v269, 0
    %vm286 = vcmp.ne.s32.totalorder %v270, 0
    %vm287 = vcmp.ne.s32.totalorder %v271, 0
    %vm288 = vcmp.ne.s32.totalorder %v272, 0
    %vm289 = vcmp.ne.s32.totalorder %v273, 0
    %vm290 = vcmp.ne.s32.totalorder %v274, 0
    %vm291 = vcmp.ne.s32.totalorder %v275, 0
    %vm292 = vcmp.ne.s32.totalorder %v276, 0
    %vm293 = vcmp.ne.s32.totalorder %v277, 0
    %vm294 = vcmp.ne.s32.totalorder %v278, 0
    %vm295 = vcmp.ne.s32.totalorder %v279, 0
    %vm296 = vcmp.ne.s32.totalorder %v280, 0
    %vm297 = vcmp.ne.s32.totalorder %v281, 0
    %vm298 = vcmp.ne.s32.totalorder %v282, 0
    %v299 = vsel %vm283, %v159, -1e+30
    %v300 = vsel %vm284, %v160, -1e+30
    %v301 = vsel %vm285, %v161, -1e+30
    %v302 = vsel %vm286, %v162, -1e+30
    %v303 = vsel %vm287, %v163, -1e+30
    %v304 = vsel %vm288, %v164, -1e+30
    %v305 = vsel %vm289, %v165, -1e+30
    %v306 = vsel %vm290, %v166, -1e+30
    %v307 = vsel %vm291, %v167, -1e+30
    %v308 = vsel %vm292, %v168, -1e+30
    %v309 = vsel %vm293, %v169, -1e+30
    %v310 = vsel %vm294, %v170, -1e+30
    %v311 = vsel %vm295, %v171, -1e+30
    %v312 = vsel %vm296, %v172, -1e+30
    %v313 = vsel %vm297, %v173, -1e+30
    %v314 = vsel %vm298, %v174, -1e+30
    %315 = vmax.xlane.f32.xlu0 %v299
    %v316 = vpop.xlane.xlu0 %315
    %317 = vmax.xlane.f32.xlu0 %v300
    %v318 = vpop.xlane.xlu0 %317
    %319 = vmax.xlane.f32.xlu0 %v301
    %v320 = vpop.xlane.xlu0 %319
    %321 = vmax.xlane.f32.xlu0 %v302
    %v322 = vpop.xlane.xlu0 %321
    %323 = vmax.xlane.f32.xlu0 %v303
    %v324 = vpop.xlane.xlu0 %323
    %325 = vmax.xlane.f32.xlu0 %v304
    %v326 = vpop.xlane.xlu0 %325
    %327 = vmax.xlane.f32.xlu0 %v305
    %v328 = vpop.xlane.xlu0 %327
    %329 = vmax.xlane.f32.xlu0 %v306
    %v330 = vpop.xlane.xlu0 %329
    %331 = vmax.xlane.f32.xlu0 %v307
    %v332 = vpop.xlane.xlu0 %331
    %333 = vmax.xlane.f32.xlu0 %v308
    %v334 = vpop.xlane.xlu0 %333
    %335 = vmax.xlane.f32.xlu0 %v309
    %v336 = vpop.xlane.xlu0 %335
    %337 = vmax.xlane.f32.xlu0 %v310
    %v338 = vpop.xlane.xlu0 %337
    %339 = vmax.xlane.f32.xlu0 %v311
    %v340 = vpop.xlane.xlu0 %339
    %341 = vmax.xlane.f32.xlu0 %v312
    %v342 = vpop.xlane.xlu0 %341
    %343 = vmax.xlane.f32.xlu0 %v313
    %v344 = vpop.xlane.xlu0 %343
    %345 = vmax.xlane.f32.xlu0 %v314
    %v346 = vpop.xlane.xlu0 %345
    %v347 = vsub.f32 %v299, %v316
    %v348 = vsub.f32 %v300, %v318
    %v349 = vsub.f32 %v301, %v320
    %v350 = vsub.f32 %v302, %v322
    %v351 = vsub.f32 %v303, %v324
    %v352 = vsub.f32 %v304, %v326
    %v353 = vsub.f32 %v305, %v328
    %v354 = vsub.f32 %v306, %v330
    %v355 = vsub.f32 %v307, %v332
    %v356 = vsub.f32 %v308, %v334
    %v357 = vsub.f32 %v309, %v336
    %v358 = vsub.f32 %v310, %v338
    %v359 = vsub.f32 %v311, %v340
    %v360 = vsub.f32 %v312, %v342
    %v361 = vsub.f32 %v313, %v344
    %v362 = vsub.f32 %v314, %v346
    %v363 = vmul.f32 %v347, 1.442695
    %v364 = vpow.pop %v363
    %v365 = vmul.f32 %v348, 1.442695
    %v366 = vpow.pop %v365
    %v367 = vmul.f32 %v349, 1.442695
    %v368 = vpow.pop %v367
    %v369 = vmul.f32 %v350, 1.442695
    %v370 = vpow.pop %v369
    %v371 = vmul.f32 %v351, 1.442695
    %v372 = vpow.pop %v371
    %v373 = vmul.f32 %v352, 1.442695
    %v374 = vpow.pop %v373
    %v375 = vmul.f32 %v353, 1.442695
    %v376 = vpow.pop %v375
    %v377 = vmul.f32 %v354, 1.442695
    %v378 = vpow.pop %v377
    %v379 = vmul.f32 %v355, 1.442695
    %v380 = vpow.pop %v379
    %v381 = vmul.f32 %v356, 1.442695
    %v382 = vpow.pop %v381
    %v383 = vmul.f32 %v357, 1.442695
    %v384 = vpow.pop %v383
    %v385 = vmul.f32 %v358, 1.442695
    %v386 = vpow.pop %v385
    %v387 = vmul.f32 %v359, 1.442695
    %v388 = vpow.pop %v387
    %v389 = vmul.f32 %v360, 1.442695
    %v390 = vpow.pop %v389
    %v391 = vmul.f32 %v361, 1.442695
    %v392 = vpow.pop %v391
    %v393 = vmul.f32 %v362, 1.442695
    %v394 = vpow.pop %v393
    %395 = vadd.xlane.f32.xlu0 %v364
    %v396 = vpop.xlane.xlu0 %395
    %397 = vadd.xlane.f32.xlu0 %v366
    %v398 = vpop.xlane.xlu0 %397
    %399 = vadd.xlane.f32.xlu0 %v368
    %v400 = vpop.xlane.xlu0 %399
    %401 = vadd.xlane.f32.xlu0 %v370
    %v402 = vpop.xlane.xlu0 %401
    %403 = vadd.xlane.f32.xlu0 %v372
    %v404 = vpop.xlane.xlu0 %403
    %405 = vadd.xlane.f32.xlu0 %v374
    %v406 = vpop.xlane.xlu0 %405
    %407 = vadd.xlane.f32.xlu0 %v376
    %v408 = vpop.xlane.xlu0 %407
    %409 = vadd.xlane.f32.xlu0 %v378
    %v410 = vpop.xlane.xlu0 %409
    %411 = vadd.xlane.f32.xlu0 %v380
    %v412 = vpop.xlane.xlu0 %411
    %413 = vadd.xlane.f32.xlu0 %v382
    %v414 = vpop.xlane.xlu0 %413
    %415 = vadd.xlane.f32.xlu0 %v384
    %v416 = vpop.xlane.xlu0 %415
    %417 = vadd.xlane.f32.xlu0 %v386
    %v418 = vpop.xlane.xlu0 %417
    %419 = vadd.xlane.f32.xlu0 %v388
    %v420 = vpop.xlane.xlu0 %419
    %421 = vadd.xlane.f32.xlu0 %v390
    %v422 = vpop.xlane.xlu0 %421
    %423 = vadd.xlane.f32.xlu0 %v392
    %v424 = vpop.xlane.xlu0 %423
    %425 = vadd.xlane.f32.xlu0 %v394
    %v426 = vpop.xlane.xlu0 %425
    %v427 = vrcp.pop %v396
    %v428 = vrcp.pop %v398
    %v429 = vrcp.pop %v400
    %v430 = vrcp.pop %v402
    %v431 = vrcp.pop %v404
    %v432 = vrcp.pop %v406
    %v433 = vrcp.pop %v408
    %v434 = vrcp.pop %v410
    %v435 = vrcp.pop %v412
    %v436 = vrcp.pop %v414
    %v437 = vrcp.pop %v416
    %v438 = vrcp.pop %v418
    %v439 = vrcp.pop %v420
    %v440 = vrcp.pop %v422
    %v441 = vrcp.pop %v424
    %v442 = vrcp.pop %v426
    %v443 = vmul.f32 %v364, %v427
    %v444 = vmul.f32 %v366, %v428
    %v445 = vmul.f32 %v368, %v429
    %v446 = vmul.f32 %v370, %v430
    %v447 = vmul.f32 %v372, %v431
    %v448 = vmul.f32 %v374, %v432
    %v449 = vmul.f32 %v376, %v433
    %v450 = vmul.f32 %v378, %v434
    %v451 = vmul.f32 %v380, %v435
    %v452 = vmul.f32 %v382, %v436
    %v453 = vmul.f32 %v384, %v437
    %v454 = vmul.f32 %v386, %v438
    %v455 = vmul.f32 %v388, %v439
    %v456 = vmul.f32 %v390, %v440
    %v457 = vmul.f32 %v392, %v441
    %v458 = vmul.f32 %v394, %v442
    %v459 = vpack.c.bf16 %v444, %v443
    %v460 = vpack.c.bf16 %v446, %v445
    %v461 = vpack.c.bf16 %v448, %v447
    %v462 = vpack.c.bf16 %v450, %v449
    %v463 = vpack.c.bf16 %v452, %v451
    %v464 = vpack.c.bf16 %v454, %v453
    %v465 = vpack.c.bf16 %v456, %v455
    %v466 = vpack.c.bf16 %v458, %v457
    %v467 = vld [vmem:[%s0] sm:$0xf]
    %v468 = vld [vmem:[%s0 + $0x4] sm:$0xf]
    %v469 = vld [vmem:[%s0 + $0x8] sm:$0xf]
    %v470 = vld [vmem:[%s0 + $0xc] sm:$0xf]
    %v471 = vld [vmem:[%s0 + $0x10] sm:$0xf]
    %v472 = vld [vmem:[%s0 + $0x14] sm:$0xf]
    %v473 = vld [vmem:[%s0 + $0x18] sm:$0xf]
    %v474 = vld [vmem:[%s0 + $0x1c] sm:$0xf]
    %v475 = vld [vmem:[%s0 + $0x20] sm:$0xf]
    %v476 = vld [vmem:[%s0 + $0x24] sm:$0xf]
    %v477 = vld [vmem:[%s0 + $0x28] sm:$0xf]
    %v478 = vld [vmem:[%s0 + $0x2c] sm:$0xf]
    %v479 = vld [vmem:[%s0 + $0x30] sm:$0xf]
    %v480 = vld [vmem:[%s0 + $0x34] sm:$0xf]
    %v481 = vld [vmem:[%s0 + $0x38] sm:$0xf]
    %v482 = vld [vmem:[%s0 + $0x3c] sm:$0xf]
    %v483 = vld [vmem:[%s4] sm:$0x1]
    %v485 = vlaneseq
    %v486 = vshrl.u32 %v485, 7
    %v487 = vsub.s32 0, %v486
    %v488 = vrot.slane %v483, %v487
    %v506 = vunpack.c.l.b16 %v467
    %v507 = vunpack.c.l.b16 %v468
    %v508 = vunpack.c.l.b16 %v469
    %v509 = vunpack.c.l.b16 %v470
    %v510 = vunpack.c.l.b16 %v471
    %v511 = vunpack.c.l.b16 %v472
    %v512 = vunpack.c.l.b16 %v473
    %v513 = vunpack.c.l.b16 %v474
    %v514 = vunpack.c.l.b16 %v475
    %v515 = vunpack.c.l.b16 %v476
    %v516 = vunpack.c.l.b16 %v477
    %v517 = vunpack.c.l.b16 %v478
    %v518 = vunpack.c.l.b16 %v479
    %v519 = vunpack.c.l.b16 %v480
    %v520 = vunpack.c.l.b16 %v481
    %v521 = vunpack.c.l.b16 %v482
    %v522 = vpack.c.b16 %v507, %v506
    %v523 = vpack.c.b16 %v509, %v508
    %v524 = vpack.c.b16 %v511, %v510
    %v525 = vpack.c.b16 %v513, %v512
    %v526 = vpack.c.b16 %v515, %v514
    %v527 = vpack.c.b16 %v517, %v516
    %v528 = vpack.c.b16 %v519, %v518
    %v529 = vpack.c.b16 %v521, %v520
    %538 = vmatprep.subr.bf16.mxu0 0
    %539 = vmatpush1.bf16.msra.mxu0 %v522
    %540 = vmatprep.subr.bf16.mxu0 0
    %541 = vmatpush1.bf16.msra.mxu0 %v523
    %542 = vmatprep.subr.bf16.mxu0 0
    %543 = vmatpush1.bf16.msra.mxu0 %v524
    %544 = vmatprep.subr.bf16.mxu0 0
    %545 = vmatpush1.bf16.msra.mxu0 %v525
    %546 = vmatprep.subr.bf16.mxu0 0
    %547 = vmatpush1.bf16.msra.mxu0 %v526
    %548 = vmatprep.subr.bf16.mxu0 0
    %549 = vmatpush1.bf16.msra.mxu0 %v527
    %550 = vmatprep.subr.bf16.mxu0 0
    %551 = vmatpush1.bf16.msra.mxu0 %v528
    %552 = vmatprep.subr.bf16.mxu0 0
    %553 = vmatpush1.bf16.msra.mxu0 %v529
    %554 = vmatprep.subr.bf16.mxu0 0
    %555 = vmatpush1.bf16.msra.mxu0 0
    %556 = vmatprep.subr.bf16.mxu0 0
    %557 = vmatpush1.bf16.msra.mxu0 0
    %558 = vmatprep.subr.bf16.mxu0 0
    %559 = vmatpush1.bf16.msra.mxu0 0
    %560 = vmatprep.subr.bf16.mxu0 0
    %561 = vmatpush1.bf16.msra.mxu0 0
    %562 = vmatprep.subr.bf16.mxu0 0
    %563 = vmatpush1.bf16.msra.mxu0 0
    %564 = vmatprep.subr.bf16.mxu0 0
    %565 = vmatpush1.bf16.msra.mxu0 0
    %566 = vmatprep.subr.bf16.mxu0 0
    %567 = vmatpush1.bf16.msra.mxu0 0
    %568 = vmatprep.subr.bf16.mxu0 0
    %569 = vmatpush1.bf16.msra.mxu0 0
    %570 = vmatprep.mubr.bf16.mxu0 0
    %571 = vmatmul.mubr.bf16.gmra.mrb[0].mxu0 %v459
    %v572 = vpop.f32.mrb[0].mxu0
    %v573 = vadd.f32 %v488, %v572
    %v574 = vpop.f32.mrb[0].mxu0
    %v575 = vpop.f32.mrb[0].mxu0
    %v576 = vadd.f32 %v488, %v575
    %v577 = vpop.f32.mrb[0].mxu0
    %578 = vmatprep.mubr.bf16.mxu0 0
    %579 = vmatmul.mubr.bf16.gmra.mrb[0].mxu0 %v460
    %v580 = vpop.f32.mrb[0].mxu0
    %v581 = vadd.f32 %v488, %v580
    %v582 = vpop.f32.mrb[0].mxu0
    %v583 = vpop.f32.mrb[0].mxu0
    %v584 = vadd.f32 %v488, %v583
    %v585 = vpop.f32.mrb[0].mxu0
    %586 = vmatprep.mubr.bf16.mxu0 0
    %587 = vmatmul.mubr.bf16.gmra.mrb[0].mxu0 %v461
    %v588 = vpop.f32.mrb[0].mxu0
    %v589 = vadd.f32 %v488, %v588
    %v590 = vpop.f32.mrb[0].mxu0
    %v591 = vpop.f32.mrb[0].mxu0
    %v592 = vadd.f32 %v488, %v591
    %v593 = vpop.f32.mrb[0].mxu0
    %594 = vmatprep.mubr.bf16.mxu0 0
    %595 = vmatmul.mubr.bf16.gmra.mrb[0].mxu0 %v462
    %v596 = vpop.f32.mrb[0].mxu0
    %v597 = vadd.f32 %v488, %v596
    %v598 = vpop.f32.mrb[0].mxu0
    %v599 = vpop.f32.mrb[0].mxu0
    %v600 = vadd.f32 %v488, %v599
    %v601 = vpop.f32.mrb[0].mxu0
    %602 = vmatprep.mubr.bf16.mxu0 0
    %603 = vmatmul.mubr.bf16.gmra.mrb[0].mxu0 %v463
    %v604 = vpop.f32.mrb[0].mxu0
    %v605 = vadd.f32 %v488, %v604
    %v606 = vpop.f32.mrb[0].mxu0
    %v607 = vpop.f32.mrb[0].mxu0
    %v608 = vadd.f32 %v488, %v607
    %v609 = vpop.f32.mrb[0].mxu0
    %610 = vmatprep.mubr.bf16.mxu0 0
    %611 = vmatmul.mubr.bf16.gmra.mrb[0].mxu0 %v464
    %v612 = vpop.f32.mrb[0].mxu0
    %v613 = vadd.f32 %v488, %v612
    %v614 = vpop.f32.mrb[0].mxu0
    %v615 = vpop.f32.mrb[0].mxu0
    %v616 = vadd.f32 %v488, %v615
    %v617 = vpop.f32.mrb[0].mxu0
    %618 = vmatprep.mubr.bf16.mxu0 0
    %619 = vmatmul.mubr.bf16.gmra.mrb[0].mxu0 %v465
    %v620 = vpop.f32.mrb[0].mxu0
    %v621 = vadd.f32 %v488, %v620
    %v622 = vpop.f32.mrb[0].mxu0
    %v623 = vpop.f32.mrb[0].mxu0
    %v624 = vadd.f32 %v488, %v623
    %v625 = vpop.f32.mrb[0].mxu0
    %626 = vmatprep.mubr.bf16.mxu0 0
    %627 = vmatmul.mubr.bf16.gmra.mrb[0].mxu0 %v466
    %v628 = vpop.f32.mrb[0].mxu0
    %v629 = vadd.f32 %v488, %v628
    %v630 = vpop.f32.mrb[0].mxu0
    %v631 = vpop.f32.mrb[0].mxu0
    %v632 = vadd.f32 %v488, %v631
    %v633 = vpop.f32.mrb[0].mxu0
    %634 = vdwg.mxu0
    %v635 = vmax.f32 %v573, 0.0
    %v636 = vmax.f32 %v576, 0.0
    %v637 = vmax.f32 %v581, 0.0
    %v638 = vmax.f32 %v584, 0.0
    %v639 = vmax.f32 %v589, 0.0
    %v640 = vmax.f32 %v592, 0.0
    %v641 = vmax.f32 %v597, 0.0
    %v642 = vmax.f32 %v600, 0.0
    %v643 = vmax.f32 %v605, 0.0
    %v644 = vmax.f32 %v608, 0.0
    %v645 = vmax.f32 %v613, 0.0
    %v646 = vmax.f32 %v616, 0.0
    %v647 = vmax.f32 %v621, 0.0
    %v648 = vmax.f32 %v624, 0.0
    %v649 = vmax.f32 %v629, 0.0
    %v650 = vmax.f32 %v632, 0.0
    %651 = vst [vmem:[#allocation2] sm:$0xff] %v635
    %652 = vst [vmem:[#allocation2 + $0x8] sm:$0xff] %v636
    %653 = vst [vmem:[#allocation2 + $0x10] sm:$0xff] %v637
    %654 = vst [vmem:[#allocation2 + $0x18] sm:$0xff] %v638
    %655 = vst [vmem:[#allocation2 + $0x20] sm:$0xff] %v639
    %656 = vst [vmem:[#allocation2 + $0x28] sm:$0xff] %v640
    %657 = vst [vmem:[#allocation2 + $0x30] sm:$0xff] %v641
    %658 = vst [vmem:[#allocation2 + $0x38] sm:$0xff] %v642
    %659 = vst [vmem:[#allocation2 + $0x40] sm:$0xff] %v643
    %660 = vst [vmem:[#allocation2 + $0x48] sm:$0xff] %v644
    %661 = vst [vmem:[#allocation2 + $0x50] sm:$0xff] %v645
    %662 = vst [vmem:[#allocation2 + $0x58] sm:$0xff] %v646
    %663 = vst [vmem:[#allocation2 + $0x60] sm:$0xff] %v647
    %664 = vst [vmem:[#allocation2 + $0x68] sm:$0xff] %v648
    %665 = vst [vmem:[#allocation2 + $0x70] sm:$0xff] %v649
    %666 = vst [vmem:[#allocation2 + $0x78] sm:$0xff] %v650
    // Predicated region
    $region22: #{tpu_custom_call.1} parent=1 // pred_check
      _
    $region23: #{tpu_custom_call.1} parent=1 // pred_check_branch
      %668 = sbr.rel (0) target = $region25
    $region24: #{tpu_custom_call.1} parent=1 // pred_region
      %s670 = ssub.s32 2048, 2048
      %671 = vsyncadd [#allocation3], %s670
      %s672 = sshll.u32 [#allocation2], 4
      %s673 = int_to_ptr.vmem [resolvable:$true] %s672
      %678 = dma.vmem_to_hbm [thread:$0]  %s673, 2048, %s5, [#allocation3], 128, 128, 8
    $region25: #{tpu_custom_call.1} parent=1 // pred_fallthru
      _
    // Predicated region
    $region26: #{tpu_custom_call.1} parent=1 // pred_check
      _
    $region27: #{tpu_custom_call.1} parent=1 // pred_check_branch
      %680 = sbr.rel (0) target = $region29
    $region28: #{tpu_custom_call.1} parent=1 // pred_region
      %681 = dma.done [#allocation3], 2048
    $region29: #{tpu_custom_call.1} parent=1 // pred_fallthru
      _
    %682 = vsyncpa [#allocation3], 1

</llo_original>
